<compile_context>
chip_gen: v7x
topology: tpu7x:2x2x1
jax: 0.10.0
libtpu: 0.0.40
codegen_flags: <defaults>
</compile_context>

<pallas_src>
import jax
import jax.numpy as jnp
from jax import lax
from jax.experimental import pallas as pl
from jax.experimental.pallas import tpu as pltpu


def _round_up(x, m):
    return ((x + m - 1) // m) * m


def _tpu_num_tensorcores():
    """Best-effort TensorCore-per-chip count (v5e/v6e = 1, v7x and older = 2)."""
    try:
        kind = jax.devices()[0].device_kind.lower()
    except Exception:
        return 1
    if "v5 lite" in kind or "v5e" in kind or "v6" in kind:
        return 1
    if "v7" in kind:
        return 2
    # v2/v3/v4/v5p expose two cores (megacore); treating them as 2 is safe.
    return 2


def _pick_bm(batch, num_cores, bm_max=2048):
    """Batch tile size.  Single-TC chips: one tile (extra tiles = pure serial overhead).
    Dual-TC chips: an even number of >=2 tiles so both cores stay busy."""
    b8 = _round_up(max(int(batch), 1), 8)
    if num_cores <= 1:
        return min(b8, bm_max)
    tiles = max(2, pl.cdiv(b8, bm_max))
    tiles = _round_up(tiles, 2)
    return _round_up(pl.cdiv(b8, tiles), 8)


def _pick_kt(T, kt_max=16):
    """Largest divisor of T that is <= kt_max (time-blocking factor)."""
    for k in range(min(kt_max, T), 0, -1):
        if T % k == 0:
            return k
    return 1


def _mlp(x, w1, b1, w2, b2, w3, b3):
    # Fused hot path: matmul -> relu -> matmul -> relu -> matmul, all in VMEM, f32 acc.
    h1 = jnp.dot(x, w1, preferred_element_type=jnp.float32) + b1
    h1 = jnp.maximum(h1, 0.0)
    h2 = jnp.dot(h1, w2, preferred_element_type=jnp.float32) + b2
    h2 = jnp.maximum(h2, 0.0)
    return jnp.dot(h2, w3, preferred_element_type=jnp.float32) + b3


# ---------------------------------------------------------------------------
# forward(x, t)
# ---------------------------------------------------------------------------
def mlp_kernel(x_ref, w1_ref, b1_ref, w2_ref, b2_ref, w3_ref, b3_ref, o_ref):
    out = _mlp(x_ref[...].astype(jnp.float32),
               w1_ref[...], b1_ref[...], w2_ref[...], b2_ref[...],
               w3_ref[...], b3_ref[...])
    o_ref[...] = out.astype(o_ref.dtype)


def diffusion_forward(x, params, *, bm=None):
    """Pallas forward for DiffusionModel.forward(x, t) (t is ignored by the module)."""
    B, d_in = x.shape
    w1, b1, w2, b2, w3, b3 = params
    h = w1.shape[1]
    d_pad = _round_up(d_in, 128)                 # lane-dense OUTPUT slab only
    if bm is None:
        bm = _pick_bm(B, _tpu_num_tensorcores())
    b_pad = _round_up(B, bm)                     # ragged batch -> zero padding

    xp = jnp.zeros((b_pad, d_in), x.dtype).at[:B, :].set(x)       # input stays 16-wide
    w3p = jnp.zeros((h, d_pad), w3.dtype).at[:, :d_in].set(w3)
    b3p = jnp.zeros((1, d_pad), b3.dtype).at[:, :d_in].set(b3)

    rep = lambda i: (0, 0)                       # weights resident across batch tiles
    out_p = pl.pallas_call(
        mlp_kernel,
        out_shape=jax.ShapeDtypeStruct((b_pad, d_pad), x.dtype),
        grid_spec=pl.GridSpec(
            grid=(b_pad // bm,),
            in_specs=[
                pl.BlockSpec((bm, d_in), lambda i: (i, 0)),   # x (unpadded lanes)
                pl.BlockSpec((d_in, h), rep),
                pl.BlockSpec((1, h), rep),
                pl.BlockSpec((h, h), rep),
                pl.BlockSpec((1, h), rep),
                pl.BlockSpec((h, d_pad), rep),
                pl.BlockSpec((1, d_pad), rep),
            ],
            out_specs=pl.BlockSpec((bm, d_pad), lambda i: (i, 0)),
        ),
        compiler_params=pltpu.CompilerParams(dimension_semantics=("parallel",)),
    )(xp, w1, b1, w2, b2, w3p, b3p)
    return out_p[:B, :d_in]


# ---------------------------------------------------------------------------
# sample(batch_size): whole reverse-diffusion loop fused into one pallas_call.
# Grid = (batch_tiles, T // kt); the x-state lives in the VMEM-resident output block
# across the sequential time axis, weights are fetched once per batch tile, per-step
# scalars sit in SMEM, and kt steps of unpadded noise are streamed per grid iteration.
# ---------------------------------------------------------------------------
def sample_kernel(c1_ref, c2_ref, c3_ref, x0_ref, noise_ref,
                  w1_ref, b1_ref, w2_ref, b2_ref, w3_ref, b3_ref, x_ref):
    tb = pl.program_id(1)
    kt = noise_ref.shape[0]                      # static time-block size

    @pl.when(tb == 0)
    def _():
        x_ref[...] = x0_ref[...]

    # Load weights once; carry x as a value across the kt unrolled sub-steps so the
    # VMEM load/store of the state is amortized kt-fold.
    w1 = w1_ref[...]; b1 = b1_ref[...]
    w2 = w2_ref[...]; b2 = b2_ref[...]
    w3 = w3_ref[...]; b3 = b3_ref[...]
    t0 = tb * kt
    x = x_ref[...].astype(jnp.float32)

    def step(j, x):
        eps = _mlp(x, w1, b1, w2, b2, w3, b3)
        c1 = c1_ref[t0 + j]          # 1/sqrt(alpha_t)
        c2 = c2_ref[t0 + j]          # (1-alpha_t)/sqrt(1-alpha_bar_t)
        c3 = c3_ref[t0 + j]          # sqrt(beta_t); 0 on the final step
        return c1 * (x - c2 * eps) + c3 * noise_ref[j].astype(jnp.float32)

    x = lax.fori_loop(0, kt, step, x, unroll=True)
    x_ref[...] = x.astype(x_ref.dtype)


def diffusion_sample(x0, noise, coefs, params, *, bm=None, kt=None):
    """Fused reverse diffusion.

    x0:    (B, D) initial N(0,1) draw.
    noise: (T, B, D) per-step N(0,1) noise (final step's noise is multiplied by 0).
    coefs: (c1, c2, c3), each (T,), already in reverse-time order.
    """
    T, B, d_in = noise.shape
    assert x0.shape == (B, d_in)
    w1, b1, w2, b2, w3, b3 = params
    h = w1.shape[1]
    if bm is None:
        bm = _pick_bm(B, _tpu_num_tensorcores())
    b_pad = _round_up(B, bm)
    if kt is None:
        kt = _pick_kt(T)

    # Noise / x0 / output stay 16-wide: no 8x lane padding of the per-step HBM stream.
    x0p = jnp.zeros((b_pad, d_in), jnp.float32).at[:B, :].set(x0)
    noisep = jnp.zeros((T, b_pad, d_in), jnp.float32).at[:, :B, :].set(noise)
    c1, c2, c3 = (c.astype(jnp.float32) for c in coefs)

    smem = pl.BlockSpec(memory_space=pltpu.MemorySpace.SMEM)
    rep = lambda b, t: (0, 0)
    # Note: if a trace ever shows the (kt, bm, 16) noise DMA exposed, add
    # pipeline_mode=pl.Buffered(3) to the noise BlockSpec.
    out_p = pl.pallas_call(
        sample_kernel,
        out_shape=jax.ShapeDtypeStruct((b_pad, d_in), jnp.float32),
        grid_spec=pl.GridSpec(
            grid=(b_pad // bm, T // kt),                          # time axis last
            in_specs=[
                smem, smem, smem,                                 # c1, c2, c3
                pl.BlockSpec((bm, d_in), lambda b, t: (b, 0)),    # x0
                pl.BlockSpec((kt, bm, d_in), lambda b, t: (t, b, 0)),  # noise block
                pl.BlockSpec((d_in, h), rep),
                pl.BlockSpec((1, h), rep),
                pl.BlockSpec((h, h), rep),
                pl.BlockSpec((1, h), rep),
                pl.BlockSpec((h, d_in), rep),
                pl.BlockSpec((1, d_in), rep),
            ],
            out_specs=pl.BlockSpec((bm, d_in), lambda b, t: (b, 0)),
        ),
        compiler_params=pltpu.CompilerParams(
            dimension_semantics=("parallel", "arbitrary")),
    )(c1, c2, c3, x0p, noisep, w1, b1, w2, b2, w3, b3)
    return out_p[:B, :]


# ---------------------------------------------------------------------------
# Host-side helpers / references
# ---------------------------------------------------------------------------
def init_params(key, input_dim, hidden_dim):
    """Deterministic synthetic init matching nn.Linear shapes (stored transposed)."""
    k1, k2, k3, k4, k5, k6 = jax.random.split(key, 6)

    def lin(kw, kb, fan_in, fan_out):
        bound = 1.0 / jnp.sqrt(fan_in)
        w = jax.random.uniform(kw, (fan_in, fan_out), jnp.float32, -bound, bound)
        b = jax.random.uniform(kb, (1, fan_out), jnp.float32, -bound, bound)
        return w, b

    w1, b1 = lin(k1, k2, input_dim, hidden_dim)
    w2, b2 = lin(k3, k4, hidden_dim, hidden_dim)
    w3, b3 = lin(k5, k6, hidden_dim, input_dim)
    return (w1, b1, w2, b2, w3, b3)


def make_coefs(num_steps):
    betas = jnp.linspace(1e-4, 0.02, num_steps, dtype=jnp.float32)
    alphas = 1.0 - betas
    alpha_bar = jnp.cumprod(alphas)
    tt = jnp.arange(num_steps)
    c1 = 1.0 / jnp.sqrt(alphas)
    c2 = (1.0 - alphas) / jnp.sqrt(1.0 - alpha_bar)
    c3 = jnp.where(tt > 0, jnp.sqrt(betas), 0.0)
    # Reverse so grid sub-step i corresponds to diffusion timestep t = num_steps-1-i.
    return c1[::-1], c2[::-1], c3[::-1]


def forward_ref(x, params):
    w1, b1, w2, b2, w3, b3 = params
    hp = lax.Precision.HIGHEST
    h1 = jnp.maximum(jnp.dot(x, w1, precision=hp) + b1, 0.0)
    h2 = jnp.maximum(jnp.dot(h1, w2, precision=hp) + b2, 0.0)
    return jnp.dot(h2, w3, precision=hp) + b3


def sample_ref(x0, noise, coefs, params):
    c1, c2, c3 = coefs

    def step(x, inp):
        c1t, c2t, c3t, nt = inp
        eps = forward_ref(x, params)
        return c1t * (x - c2t * eps) + c3t * nt, None

    x, _ = lax.scan(step, x0, (c1, c2, c3, noise))
    return x


if __name__ == "__main__":
    input_dim = 16
    hidden_dim = 128      # nn.Module default
    num_steps = 64        # module default is 1000; kept small for a quick self-check
    batch = 64

    key = jax.random.PRNGKey(0)
    kx, kp, k0, kn = jax.random.split(key, 4)
    x = jax.random.normal(kx, (batch, input_dim), jnp.float32)
    t = jnp.zeros((batch,), jnp.int32)   # forward() ignores t; kept for API parity
    params = init_params(kp, input_dim, hidden_dim)

    # --- forward(x, t) ---
    out = jax.block_until_ready(diffusion_forward(x, params))
    ref = forward_ref(x, params)
    assert out.shape == (batch, input_dim)
    # Kernel matmuls use default MXU precision while the reference pins HIGHEST, so
    # allow one bf16-pass worth of rounding (flagged correctness concern).
    assert jnp.allclose(out, ref, atol=1e-2, rtol=1e-2), \
        float(jnp.max(jnp.abs(out - ref)))

    # --- sample(): fused reverse-diffusion loop (noise drawn host-side so the Pallas
    #     kernel and the pure-JAX reference see bit-identical inputs) ---
    x0 = jax.random.normal(k0, (batch, input_dim), jnp.float32)
    noise = jax.random.normal(kn, (num_steps, batch, input_dim), jnp.float32)
    coefs = make_coefs(num_steps)
    samp = jax.block_until_ready(diffusion_sample(x0, noise, coefs, params))
    samp_ref = sample_ref(x0, noise, coefs, params)
    assert samp.shape == (batch, input_dim)
    assert jnp.allclose(samp, samp_ref, atol=2e-2, rtol=2e-2), \
        float(jnp.max(jnp.abs(samp - samp_ref)))

    print("KERNEL_OK")
</pallas_src>

<mosaic_0001>
module attributes {stable_mosaic.version = 11 : i64} {
  func.func @mlp_kernel(%arg0: i32, %arg1: memref<32x16xf32, #tpu.memory_space<vmem>>, %arg2: memref<16x128xf32, #tpu.memory_space<vmem>>, %arg3: memref<1x128xf32, #tpu.memory_space<vmem>>, %arg4: memref<128x128xf32, #tpu.memory_space<vmem>>, %arg5: memref<1x128xf32, #tpu.memory_space<vmem>>, %arg6: memref<128x128xf32, #tpu.memory_space<vmem>>, %arg7: memref<1x128xf32, #tpu.memory_space<vmem>>, %arg8: memref<32x128xf32, #tpu.memory_space<vmem>>) attributes {dimension_semantics = [#tpu.dimension_semantics<parallel>], iteration_bounds = array<i64: 2>, scalar_prefetch = 0 : i64, scratch_operands = 0 : i64, tpu.core_type = #tpu.core_type<tc>, window_params = [{transform_indices = @transform_0, window_bounds = array<i64: 32, 16>}, {pipeline_mode = #tpu.pipeline_mode<synchronous>, transform_indices = @transform_1, window_bounds = array<i64: 16, 128>}, {pipeline_mode = #tpu.pipeline_mode<synchronous>, transform_indices = @transform_2, window_bounds = array<i64: 1, 128>}, {pipeline_mode = #tpu.pipeline_mode<synchronous>, transform_indices = @transform_3, window_bounds = array<i64: 128, 128>}, {pipeline_mode = #tpu.pipeline_mode<synchronous>, transform_indices = @transform_4, window_bounds = array<i64: 1, 128>}, {pipeline_mode = #tpu.pipeline_mode<synchronous>, transform_indices = @transform_5, window_bounds = array<i64: 128, 128>}, {pipeline_mode = #tpu.pipeline_mode<synchronous>, transform_indices = @transform_6, window_bounds = array<i64: 1, 128>}, {transform_indices = @transform_7, window_bounds = array<i64: 32, 128>}]} {
    %c0 = arith.constant 0 : index
    %c0_0 = arith.constant 0 : index
    %0 = vector.load %arg1[%c0, %c0_0] : memref<32x16xf32, #tpu.memory_space<vmem>>, vector<32x16xf32>
    %c0_1 = arith.constant 0 : index
    %c0_2 = arith.constant 0 : index
    %1 = vector.load %arg2[%c0_1, %c0_2] : memref<16x128xf32, #tpu.memory_space<vmem>>, vector<16x128xf32>
    %c0_3 = arith.constant 0 : index
    %c0_4 = arith.constant 0 : index
    %2 = vector.load %arg3[%c0_3, %c0_4] : memref<1x128xf32, #tpu.memory_space<vmem>>, vector<1x128xf32>
    %c0_5 = arith.constant 0 : index
    %c0_6 = arith.constant 0 : index
    %3 = vector.load %arg4[%c0_5, %c0_6] : memref<128x128xf32, #tpu.memory_space<vmem>>, vector<128x128xf32>
    %c0_7 = arith.constant 0 : index
    %c0_8 = arith.constant 0 : index
    %4 = vector.load %arg5[%c0_7, %c0_8] : memref<1x128xf32, #tpu.memory_space<vmem>>, vector<1x128xf32>
    %c0_9 = arith.constant 0 : index
    %c0_10 = arith.constant 0 : index
    %5 = vector.load %arg6[%c0_9, %c0_10] : memref<128x128xf32, #tpu.memory_space<vmem>>, vector<128x128xf32>
    %c0_11 = arith.constant 0 : index
    %c0_12 = arith.constant 0 : index
    %6 = vector.load %arg7[%c0_11, %c0_12] : memref<1x128xf32, #tpu.memory_space<vmem>>, vector<1x128xf32>
    %cst = arith.constant dense<0.000000e+00> : vector<32x128xf32>
    %7 = tpu.matmul %0, %1, %cst {dimension_numbers = #tpu.dot_dimension_numbers<[1], [0], [0], [1], [0, 0, 1, 1], [], []>} : vector<32x16xf32>, vector<16x128xf32>, vector<32x128xf32> -> vector<32x128xf32>
    %8 = vector.broadcast %2 : vector<1x128xf32> to vector<32x128xf32>
    %9 = arith.addf %7, %8 : vector<32x128xf32>
    %cst_13 = arith.constant 0.000000e+00 : f32
    %10 = vector.broadcast %cst_13 : f32 to vector<32x128xf32>
    %11 = arith.maximumf %9, %10 : vector<32x128xf32>
    %cst_14 = arith.constant dense<0.000000e+00> : vector<32x128xf32>
    %12 = tpu.matmul %11, %3, %cst_14 {dimension_numbers = #tpu.dot_dimension_numbers<[1], [0], [0], [1], [0, 0, 1, 1], [], []>} : vector<32x128xf32>, vector<128x128xf32>, vector<32x128xf32> -> vector<32x128xf32>
    %13 = vector.broadcast %4 : vector<1x128xf32> to vector<32x128xf32>
    %14 = arith.addf %12, %13 : vector<32x128xf32>
    %cst_15 = arith.constant 0.000000e+00 : f32
    %15 = vector.broadcast %cst_15 : f32 to vector<32x128xf32>
    %16 = arith.maximumf %14, %15 : vector<32x128xf32>
    %cst_16 = arith.constant dense<0.000000e+00> : vector<32x128xf32>
    %17 = tpu.matmul %16, %5, %cst_16 {dimension_numbers = #tpu.dot_dimension_numbers<[1], [0], [0], [1], [0, 0, 1, 1], [], []>} : vector<32x128xf32>, vector<128x128xf32>, vector<32x128xf32> -> vector<32x128xf32>
    %18 = vector.broadcast %6 : vector<1x128xf32> to vector<32x128xf32>
    %19 = arith.addf %17, %18 : vector<32x128xf32>
    %c0_17 = arith.constant 0 : index
    %c0_18 = arith.constant 0 : index
    %20 = vector.load %arg8[%c0_17, %c0_18] : memref<32x128xf32, #tpu.memory_space<vmem>>, vector<32x128xf32>
    tpu.vector_store %arg8[%c0_17, %c0_18], %19 {strides = array<i32>} : memref<32x128xf32, #tpu.memory_space<vmem>>, vector<32x128xf32>,
    return
  }
  func.func @transform_0(%arg0: i32) -> (i32, i32) {
    %c0_i32 = arith.constant 0 : i32
    %c0_i32_0 = arith.constant 0 : i32
    return %arg0, %c0_i32 : i32, i32
  }
  func.func @transform_1(%arg0: i32) -> (i32, i32) {
    %c0_i32 = arith.constant 0 : i32
    %c0_i32_0 = arith.constant 0 : i32
    %c0_i32_1 = arith.constant 0 : i32
    return %c0_i32, %c0_i32_0 : i32, i32
  }
  func.func @transform_2(%arg0: i32) -> (i32, i32) {
    %c0_i32 = arith.constant 0 : i32
    %c0_i32_0 = arith.constant 0 : i32
    %c0_i32_1 = arith.constant 0 : i32
    return %c0_i32, %c0_i32_0 : i32, i32
  }
  func.func @transform_3(%arg0: i32) -> (i32, i32) {
    %c0_i32 = arith.constant 0 : i32
    %c0_i32_0 = arith.constant 0 : i32
    %c0_i32_1 = arith.constant 0 : i32
    return %c0_i32, %c0_i32_0 : i32, i32
  }
  func.func @transform_4(%arg0: i32) -> (i32, i32) {
    %c0_i32 = arith.constant 0 : i32
    %c0_i32_0 = arith.constant 0 : i32
    %c0_i32_1 = arith.constant 0 : i32
    return %c0_i32, %c0_i32_0 : i32, i32
  }
  func.func @transform_5(%arg0: i32) -> (i32, i32) {
    %c0_i32 = arith.constant 0 : i32
    %c0_i32_0 = arith.constant 0 : i32
    %c0_i32_1 = arith.constant 0 : i32
    return %c0_i32, %c0_i32_0 : i32, i32
  }
  func.func @transform_6(%arg0: i32) -> (i32, i32) {
    %c0_i32 = arith.constant 0 : i32
    %c0_i32_0 = arith.constant 0 : i32
    %c0_i32_1 = arith.constant 0 : i32
    return %c0_i32, %c0_i32_0 : i32, i32
  }
  func.func @transform_7(%arg0: i32) -> (i32, i32) {
    %c0_i32 = arith.constant 0 : i32
    %c0_i32_0 = arith.constant 0 : i32
    return %arg0, %c0_i32 : i32, i32
  }
}

</mosaic_0001>

<llo_original>
// kernel: tpu_custom_call.1
$region0: #{tpu_custom_call.1}
  #allocation0 [shape = 'u32[]', space=smem, size = 0x4, offset = 0x4, fixed_abs, tag = 'smem constant byte address 0x4 - core index']
  #allocation1 [shape = 'u32[144,128]{1,0:T(1,128)}', space=vmem, size = 0x12000, scoped, tag = 'internal scratch']
  %s0 = inlined_call_operand.vmem [shape: f32[64,16], index: 0, kind: input, shape index: {}]
  %s1 = inlined_call_operand.vmem [shape: f32[16,128], index: 1, kind: input, shape index: {}]
  %s2 = inlined_call_operand.vmem [shape: f32[1,128], index: 2, kind: input, shape index: {}]
  %s3 = inlined_call_operand.hbm [shape: f32[128,128], index: 3, kind: input, shape index: {}]
  %s4 = inlined_call_operand.vmem [shape: f32[1,128], index: 4, kind: input, shape index: {}]
  %s5 = inlined_call_operand.hbm [shape: f32[128,128], index: 5, kind: input, shape index: {}]
  %s6 = inlined_call_operand.vmem [shape: f32[1,128], index: 6, kind: input, shape index: {}]
  %s7 = inlined_call_operand.hbm [shape: f32[64,128], index: 7, kind: output, shape index: {}]
  %s8 = sld [smem:[#allocation0]]
  $region69: #{tpu_custom_call.1} parent=0
    _
  %s10 = ssub.s32 1, %s8
  %s11 = scalar_select 0, %s10, %s8
  $region1: #{tpu_custom_call.1} parent=0
    #allocation2 [shape = 'u8[65536]{0}', space=vmem, size = 0x10000, scoped, tag = 'input window, operand 3, single buffered']
    #allocation3 [shape = 's32[2]{0}', space=sflag, size = 0x8, scoped, tag = 'scoped memory for tpu_custom_call.1']
    #allocation4 [shape = 's32[2]{0}', space=sflag, size = 0x8, scoped, tag = 'scoped memory for tpu_custom_call.1']
    #allocation5 [shape = 'u8[65536]{0}', space=vmem, size = 0x10000, scoped, tag = 'input window, operand 5, single buffered']
    #allocation6 [shape = 's32[1]{0}', space=sflag, size = 0x4, scoped, tag = 'scoped memory for tpu_custom_call.1']
    #allocation7 [shape = 'u8[32768]{0}', space=vmem, size = 0x8000, scoped, tag = 'output window, operand 0']
    %12 = vsyncpa [#allocation3], 0
    %13 = vsyncpa [#allocation6], 0
    %14 = vsyncpa [#allocation4], 0
    %s15 = scalar_lea.sflag [#allocation4], 1
    %16 = vsyncpa %s15, 0
    loop: start=0, step=1, limit=4
    $region2: #{tpu_custom_call.1} parent=1 // loop_pre_header
      _
    $region3: #{tpu_custom_call.1} parent=1 // loop_header
      %s18 = sphi 0, %s22
      %p19 = scmp.ge.s32.totalorder %s18, 4
      %s28 = sphi 0, %s30
      %s31 = sphi 0, %s28
      %s32 = sphi 0, %s31
      %s48 = sphi 0, %s32
      %s52 = sphi 0, %s52
      %s54 = sphi 0, %s52
      %s55 = sphi 0, %s54
      %s69 = sphi 0, %s55
      %s73 = sphi 0, %s73
      %s75 = sphi 0, %s73
      %s76 = sphi 0, %s75
      %s90 = sphi 0, %s76
      %s94 = sphi 0, %s94
      %s96 = sphi 0, %s94
      %s97 = sphi 0, %s96
      %s111 = sphi 0, %s97
      %s115 = sphi 0, %s115
      %s117 = sphi 0, %s115
      %s118 = sphi 0, %s117
      %s132 = sphi 0, %s118
      %s136 = sphi 0, %s136
      %s138 = sphi 0, %s136
      %s139 = sphi 0, %s138
      %s153 = sphi 0, %s139
      %s157 = sphi 0, %s157
      %s159 = sphi 0, %s157
      %s160 = sphi 0, %s159
      %s174 = sphi 0, %s160
      %s180 = sphi 0, %s182
      %s183 = sphi 0, %s180
      %s184 = sphi 0, %s183
      %s200 = sphi 0, %s184
    $region4: #{tpu_custom_call.1} parent=1 // loop_header_branch
      %21 = sbr.rel (%p19) target = $region8
    $region5: #{tpu_custom_call.1} parent=1 // loop_body
      %s23 = ssub.s32 %s18, 1
      %s24 = ssub.s32 %s18, 2
      %s25 = sadd.s32 %s18, 1
      %s26 = ssub.s32 %s18, %s25
      %p27 = scmp.eq.s32.totalorder %s26, 0
      %s29 = sadd.s32 %s28, 1
      %s30 = scalar_select %p27, %s28, %s29
      %p33 = pneg %p27
      %p34 = scmp.eq.s32.totalorder %s18, 1
      %p35 = por %p33, %p34
      %p36 = scmp.ne.s32.totalorder %s28, %s31
      %p37 = scmp.eq.s32.totalorder %s18, 0
      %p38 = por %p36, %p37
      %p39 = scmp.ne.s32.totalorder %s28, %s31
      %p40 = scmp.eq.s32.totalorder %s23, 1
      %p41 = por %p39, %p40
      %p42 = scmp.ne.s32.totalorder %s31, %s32
      %p43 = scmp.eq.s32.totalorder %s23, 0
      %p44 = por %p42, %p43
      %p45 = scmp.ne.s32.totalorder %s31, %s32
      %p46 = scmp.eq.s32.totalorder %s24, 1
      %p47 = por %p45, %p46
      %p49 = scmp.ne.s32.totalorder %s32, %s48
      %p50 = scmp.eq.s32.totalorder %s24, 0
      %p51 = por %p49, %p50
      %s53 = sadd.s32 %s52, 1
      %p56 = scmp.eq.s32.totalorder %s18, 1
      %p57 = scmp.ne.s32.totalorder %s52, %s54
      %p58 = scmp.eq.s32.totalorder %s18, 0
      %p59 = por %p57, %p58
      %p60 = scmp.ne.s32.totalorder %s52, %s54
      %p61 = scmp.eq.s32.totalorder %s23, 1
      %p62 = por %p60, %p61
      %p63 = scmp.ne.s32.totalorder %s54, %s55
      %p64 = scmp.eq.s32.totalorder %s23, 0
      %p65 = por %p63, %p64
      %p66 = scmp.ne.s32.totalorder %s54, %s55
      %p67 = scmp.eq.s32.totalorder %s24, 1
      %p68 = por %p66, %p67
      %p70 = scmp.ne.s32.totalorder %s55, %s69
      %p71 = scmp.eq.s32.totalorder %s24, 0
      %p72 = por %p70, %p71
      %s74 = sadd.s32 %s73, 1
      %p77 = scmp.eq.s32.totalorder %s18, 1
      %p78 = scmp.ne.s32.totalorder %s73, %s75
      %p79 = scmp.eq.s32.totalorder %s18, 0
      %p80 = por %p78, %p79
      %p81 = scmp.ne.s32.totalorder %s73, %s75
      %p82 = scmp.eq.s32.totalorder %s23, 1
      %p83 = por %p81, %p82
      %p84 = scmp.ne.s32.totalorder %s75, %s76
      %p85 = scmp.eq.s32.totalorder %s23, 0
      %p86 = por %p84, %p85
      %p87 = scmp.ne.s32.totalorder %s75, %s76
      %p88 = scmp.eq.s32.totalorder %s24, 1
      %p89 = por %p87, %p88
      %p91 = scmp.ne.s32.totalorder %s76, %s90
      %p92 = scmp.eq.s32.totalorder %s24, 0
      %p93 = por %p91, %p92
      %s95 = sadd.s32 %s94, 1
      %p98 = scmp.eq.s32.totalorder %s18, 1
      %p99 = scmp.ne.s32.totalorder %s94, %s96
      %p100 = scmp.eq.s32.totalorder %s18, 0
      %p101 = por %p99, %p100
      %p102 = scmp.ne.s32.totalorder %s94, %s96
      %p103 = scmp.eq.s32.totalorder %s23, 1
      %p104 = por %p102, %p103
      %p105 = scmp.ne.s32.totalorder %s96, %s97
      %p106 = scmp.eq.s32.totalorder %s23, 0
      %p107 = por %p105, %p106
      %p108 = scmp.ne.s32.totalorder %s96, %s97
      %p109 = scmp.eq.s32.totalorder %s24, 1
      %p110 = por %p108, %p109
      %p112 = scmp.ne.s32.totalorder %s97, %s111
      %p113 = scmp.eq.s32.totalorder %s24, 0
      %p114 = por %p112, %p113
      %s116 = sadd.s32 %s115, 1
      %p119 = scmp.eq.s32.totalorder %s18, 1
      %p120 = scmp.ne.s32.totalorder %s115, %s117
      %p121 = scmp.eq.s32.totalorder %s18, 0
      %p122 = por %p120, %p121
      %p123 = scmp.ne.s32.totalorder %s115, %s117
      %p124 = scmp.eq.s32.totalorder %s23, 1
      %p125 = por %p123, %p124
      %p126 = scmp.ne.s32.totalorder %s117, %s118
      %p127 = scmp.eq.s32.totalorder %s23, 0
      %p128 = por %p126, %p127
      %p129 = scmp.ne.s32.totalorder %s117, %s118
      %p130 = scmp.eq.s32.totalorder %s24, 1
      %p131 = por %p129, %p130
      %p133 = scmp.ne.s32.totalorder %s118, %s132
      %p134 = scmp.eq.s32.totalorder %s24, 0
      %p135 = por %p133, %p134
      %s137 = sadd.s32 %s136, 1
      %p140 = scmp.eq.s32.totalorder %s18, 1
      %p141 = scmp.ne.s32.totalorder %s136, %s138
      %p142 = scmp.eq.s32.totalorder %s18, 0
      %p143 = por %p141, %p142
      %p144 = scmp.ne.s32.totalorder %s136, %s138
      %p145 = scmp.eq.s32.totalorder %s23, 1
      %p146 = por %p144, %p145
      %p147 = scmp.ne.s32.totalorder %s138, %s139
      %p148 = scmp.eq.s32.totalorder %s23, 0
      %p149 = por %p147, %p148
      %p150 = scmp.ne.s32.totalorder %s138, %s139
      %p151 = scmp.eq.s32.totalorder %s24, 1
      %p152 = por %p150, %p151
      %p154 = scmp.ne.s32.totalorder %s139, %s153
      %p155 = scmp.eq.s32.totalorder %s24, 0
      %p156 = por %p154, %p155
      %s158 = sadd.s32 %s157, 1
      %p161 = scmp.eq.s32.totalorder %s18, 1
      %p162 = scmp.ne.s32.totalorder %s157, %s159
      %p163 = scmp.eq.s32.totalorder %s18, 0
      %p164 = por %p162, %p163
      %p165 = scmp.ne.s32.totalorder %s157, %s159
      %p166 = scmp.eq.s32.totalorder %s23, 1
      %p167 = por %p165, %p166
      %p168 = scmp.ne.s32.totalorder %s159, %s160
      %p169 = scmp.eq.s32.totalorder %s23, 0
      %p170 = por %p168, %p169
      %p171 = scmp.ne.s32.totalorder %s159, %s160
      %p172 = scmp.eq.s32.totalorder %s24, 1
      %p173 = por %p171, %p172
      %p175 = scmp.ne.s32.totalorder %s160, %s174
      %p176 = scmp.eq.s32.totalorder %s24, 0
      %p177 = por %p175, %p176
      %s178 = ssub.s32 %s18, %s25
      %p179 = scmp.eq.s32.totalorder %s178, 0
      %s181 = sadd.s32 %s180, 1
      %s182 = scalar_select %p179, %s180, %s181
      %p185 = pneg %p179
      %p186 = scmp.eq.s32.totalorder %s18, 1
      %p187 = por %p185, %p186
      %p188 = scmp.ne.s32.totalorder %s180, %s183
      %p189 = scmp.eq.s32.totalorder %s18, 0
      %p190 = por %p188, %p189
      %p191 = scmp.ne.s32.totalorder %s180, %s183
      %p192 = scmp.eq.s32.totalorder %s23, 1
      %p193 = por %p191, %p192
      %p194 = scmp.ne.s32.totalorder %s183, %s184
      %p195 = scmp.eq.s32.totalorder %s23, 0
      %p196 = por %p194, %p195
      %p197 = scmp.ne.s32.totalorder %s183, %s184
      %p198 = scmp.eq.s32.totalorder %s24, 1
      %p199 = por %p197, %p198
      %p201 = scmp.ne.s32.totalorder %s184, %s200
      %p202 = scmp.eq.s32.totalorder %s24, 0
      %p203 = por %p201, %p202
      %p204 = scmp.le.s32.totalorder 1, %s18
      %p205 = scmp.lt.s32.totalorder %s18, 3
      %p206 = pnand %p204, %p205
      %p207 = pneg %p206
      // Predicated region
      $region9: #{tpu_custom_call.1} parent=5 // pred_check
        _
      $region10: #{tpu_custom_call.1} parent=5 // pred_check_branch
        %209 = sbr.rel (%p206) target = $region12
      $region11: #{tpu_custom_call.1} parent=5 // pred_region
        %s210 = ssub.s32 %s18, 1
        // Predicated region
        $region13: #{tpu_custom_call.1} parent=11 // pred_check
          %p211 = pneg %p65
        $region14: #{tpu_custom_call.1} parent=11 // pred_check_branch
          %213 = sbr.rel (%p211) target = $region16
        $region15: #{tpu_custom_call.1} parent=11 // pred_region
          _
        $region16: #{tpu_custom_call.1} parent=11 // pred_fallthru
          _
        // Predicated region
        $region17: #{tpu_custom_call.1} parent=11 // pred_check
          %p214 = pneg %p86
        $region18: #{tpu_custom_call.1} parent=11 // pred_check_branch
          %216 = sbr.rel (%p214) target = $region20
        $region19: #{tpu_custom_call.1} parent=11 // pred_region
          _
        $region20: #{tpu_custom_call.1} parent=11 // pred_fallthru
          _
        // Predicated region
        $region21: #{tpu_custom_call.1} parent=11 // pred_check
          %p217 = pneg %p107
        $region22: #{tpu_custom_call.1} parent=11 // pred_check_branch
          %219 = sbr.rel (%p217) target = $region24
        $region23: #{tpu_custom_call.1} parent=11 // pred_region
          %s221 = ssub.s32 2048, 2048
          %222 = vsyncadd [#allocation3], %s221
          %s223 = sshll.u32 [#allocation2], 4
          %s224 = int_to_ptr.vmem [resolvable:$true] %s223
          %229 = dma.hbm_to_vmem [thread:$0]  %s3, 2048, %s224, [#allocation3], 128, 128, 8
        $region24: #{tpu_custom_call.1} parent=11 // pred_fallthru
          _
        // Predicated region
        $region25: #{tpu_custom_call.1} parent=11 // pred_check
          %p230 = pneg %p128
        $region26: #{tpu_custom_call.1} parent=11 // pred_check_branch
          %232 = sbr.rel (%p230) target = $region28
        $region27: #{tpu_custom_call.1} parent=11 // pred_region
          _
        $region28: #{tpu_custom_call.1} parent=11 // pred_fallthru
          _
        // Predicated region
        $region29: #{tpu_custom_call.1} parent=11 // pred_check
          %p233 = pneg %p149
        $region30: #{tpu_custom_call.1} parent=11 // pred_check_branch
          %235 = sbr.rel (%p233) target = $region32
        $region31: #{tpu_custom_call.1} parent=11 // pred_region
          %s237 = ssub.s32 2048, 2048
          %238 = vsyncadd [#allocation6], %s237
          %s239 = sshll.u32 [#allocation5], 4
          %s240 = int_to_ptr.vmem [resolvable:$true] %s239
          %245 = dma.hbm_to_vmem [thread:$0]  %s5, 2048, %s240, [#allocation6], 128, 128, 8
        $region32: #{tpu_custom_call.1} parent=11 // pred_fallthru
          _
        // Predicated region
        $region33: #{tpu_custom_call.1} parent=11 // pred_check
          %p246 = pneg %p170
        $region34: #{tpu_custom_call.1} parent=11 // pred_check_branch
          %248 = sbr.rel (%p246) target = $region36
        $region35: #{tpu_custom_call.1} parent=11 // pred_region
          _
        $region36: #{tpu_custom_call.1} parent=11 // pred_fallthru
          _
      $region12: #{tpu_custom_call.1} parent=5 // pred_fallthru
        _
      %p249 = scmp.lt.s32.totalorder %s18, 2
      // Predicated region
      $region37: #{tpu_custom_call.1} parent=5 // pred_check
        %p250 = pneg %p249
      $region38: #{tpu_custom_call.1} parent=5 // pred_check_branch
        %252 = sbr.rel (%p250) target = $region40
      $region39: #{tpu_custom_call.1} parent=5 // pred_region
        // Predicated region
        $region41: #{tpu_custom_call.1} parent=39 // pred_check
          %p253 = pneg %p38
        $region42: #{tpu_custom_call.1} parent=39 // pred_check_branch
          %255 = sbr.rel (%p253) target = $region44
        $region43: #{tpu_custom_call.1} parent=39 // pred_region
          %s256 = smul.u32 4, %s18
          %p257 = scmp.lt.s32.totalorder %s256, 7
          %s258 = scalar_select %p257, %s256, 7
          %s259 = smul.addr %s258, 8
          %s260 = scalar_lea.vmem %s0, %s259
          %s261 = smul.u32 4, %s18
        $region44: #{tpu_custom_call.1} parent=39 // pred_fallthru
          _
      $region40: #{tpu_custom_call.1} parent=5 // pred_fallthru
        _
      %p262 = scmp.le.s32.totalorder 1, %s18
      %p263 = scmp.lt.s32.totalorder %s18, 3
      %p264 = pnand %p262, %p263
      %p265 = pneg %p264
      // Predicated region
      $region45: #{tpu_custom_call.1} parent=5 // pred_check
        _
      $region46: #{tpu_custom_call.1} parent=5 // pred_check_branch
        %267 = sbr.rel (%p264) target = $region48
      $region47: #{tpu_custom_call.1} parent=5 // pred_region
        %s268 = ssub.s32 %s18, 1
        // Predicated region
        $region49: #{tpu_custom_call.1} parent=47 // pred_check
          %p269 = pneg %p107
        $region50: #{tpu_custom_call.1} parent=47 // pred_check_branch
          %271 = sbr.rel (%p269) target = $region52
        $region51: #{tpu_custom_call.1} parent=47 // pred_region
          %272 = dma.done [#allocation3], 2048
        $region52: #{tpu_custom_call.1} parent=47 // pred_fallthru
          _
        // Predicated region
        $region53: #{tpu_custom_call.1} parent=47 // pred_check
          %p273 = pneg %p149
        $region54: #{tpu_custom_call.1} parent=47 // pred_check_branch
          %275 = sbr.rel (%p273) target = $region56
        $region55: #{tpu_custom_call.1} parent=47 // pred_region
          %276 = dma.done [#allocation6], 2048
        $region56: #{tpu_custom_call.1} parent=47 // pred_fallthru
          _
        %s277 = smul.u32 4, %s23
        %p278 = scmp.lt.s32.totalorder %s277, 7
        %s279 = scalar_select %p278, %s277, 7
        %s280 = smul.addr %s279, 8
        %s281 = scalar_lea.vmem %s0, %s280
        %p282 = pneg %p44
        %p283 = pneg %p41
        %p284 = pneg %p65
        %p285 = pneg %p62
        %p286 = pneg %p86
        %p287 = pneg %p83
        %p288 = pneg %p107
        %p289 = pneg %p104
        %p290 = pneg %p128
        %p291 = pneg %p125
        %p292 = pneg %p149
        %p293 = pneg %p146
        %p294 = pneg %p170
        %p295 = pneg %p167
        %p296 = pneg %p196
        %p297 = pneg %p193
        %s298 = sand.u32 %s183, 1
        %s299 = scalar_lea.sflag [#allocation4], %s298
        %s300 = sand.u32 %s183, 1
        %s301 = smul.addr %s300, 32
        %s302 = scalar_lea.vmem [#allocation7], %s301
        %s303 = smul.u32 4, %s23
        %p304 = scmp.lt.s32.totalorder %s303, 7
        %s305 = scalar_select %p304, %s303, 7
        %s306 = smul.addr %s305, 8
        %s307 = scalar_lea.vmem %s0, %s306
        %s308 = smul.u32 4, %s23
        %s309 = smul.u32 4, %s23
        %v310 = vld [vmem:[%s307] sm:$0xff]
        %v311 = vld [vmem:[%s307 + $0x8] sm:$0xff]
        %v312 = vld [vmem:[%s307 + $0x10] sm:$0xff]
        %v313 = vld [vmem:[%s307 + $0x18] sm:$0xff]
        %v314 = vld [vmem:[%s1] sm:$0xff]
        %v315 = vld [vmem:[%s1 + $0x8] sm:$0xff]
        %v316 = vld [vmem:[%s2] sm:$0x1]
        %v317 = vld [vmem:[#allocation2] sm:$0xff]
        %v318 = vld [vmem:[#allocation2 + $0x8] sm:$0xff]
        %v319 = vld [vmem:[#allocation2 + $0x10] sm:$0xff]
        %v320 = vld [vmem:[#allocation2 + $0x18] sm:$0xff]
        %v321 = vld [vmem:[#allocation2 + $0x20] sm:$0xff]
        %v322 = vld [vmem:[#allocation2 + $0x28] sm:$0xff]
        %v323 = vld [vmem:[#allocation2 + $0x30] sm:$0xff]
        %v324 = vld [vmem:[#allocation2 + $0x38] sm:$0xff]
        %v325 = vld [vmem:[#allocation2 + $0x40] sm:$0xff]
        %v326 = vld [vmem:[#allocation2 + $0x48] sm:$0xff]
        %v327 = vld [vmem:[#allocation2 + $0x50] sm:$0xff]
        %v328 = vld [vmem:[#allocation2 + $0x58] sm:$0xff]
        %v329 = vld [vmem:[#allocation2 + $0x60] sm:$0xff]
        %v330 = vld [vmem:[#allocation2 + $0x68] sm:$0xff]
        %v331 = vld [vmem:[#allocation2 + $0x70] sm:$0xff]
        %v332 = vld [vmem:[#allocation2 + $0x78] sm:$0xff]
        %v333 = vld [vmem:[%s4] sm:$0x1]
        %v334 = vld [vmem:[#allocation5] sm:$0xff]
        %v335 = vld [vmem:[#allocation5 + $0x8] sm:$0xff]
        %v336 = vld [vmem:[#allocation5 + $0x10] sm:$0xff]
        %v337 = vld [vmem:[#allocation5 + $0x18] sm:$0xff]
        %v338 = vld [vmem:[#allocation5 + $0x20] sm:$0xff]
        %v339 = vld [vmem:[#allocation5 + $0x28] sm:$0xff]
        %v340 = vld [vmem:[#allocation5 + $0x30] sm:$0xff]
        %v341 = vld [vmem:[#allocation5 + $0x38] sm:$0xff]
        %v342 = vld [vmem:[#allocation5 + $0x40] sm:$0xff]
        %v343 = vld [vmem:[#allocation5 + $0x48] sm:$0xff]
        %v344 = vld [vmem:[#allocation5 + $0x50] sm:$0xff]
        %v345 = vld [vmem:[#allocation5 + $0x58] sm:$0xff]
        %v346 = vld [vmem:[#allocation5 + $0x60] sm:$0xff]
        %v347 = vld [vmem:[#allocation5 + $0x68] sm:$0xff]
        %v348 = vld [vmem:[#allocation5 + $0x70] sm:$0xff]
        %v349 = vld [vmem:[#allocation5 + $0x78] sm:$0xff]
        %v350 = vld [vmem:[%s6] sm:$0x1]
        %v352 = vlaneseq
        %v353 = vshrl.u32 %v352, 7
        %v354 = vsub.s32 0, %v353
        %v355 = vrot.slane %v316, %v354
        %vm357 = vcmask 130048
        %v359 = vsel %vm357, %v310, 0
        %v362 = vsel %vm357, %v311, 0
        %v365 = vsel %vm357, %v312, 0
        %v368 = vsel %vm357, %v313, 0
        %370 = vmatprep.subr.mxu0 0.0
        %371 = vmatpush1.msra.mxu0 %v314
        %372 = vmatprep.subr.mxu0 0.0
        %373 = vmatpush1.msra.mxu0 %v315
        %374 = vmatprep.subr.mxu0 0.0
        %375 = vmatpush1.msra.mxu0 0.0
        %376 = vmatprep.subr.mxu0 0.0
        %377 = vmatpush1.msra.mxu0 0.0
        %378 = vmatprep.subr.mxu0 0.0
        %379 = vmatpush1.msra.mxu0 0.0
        %380 = vmatprep.subr.mxu0 0.0
        %381 = vmatpush1.msra.mxu0 0.0
        %382 = vmatprep.subr.mxu0 0.0
        %383 = vmatpush1.msra.mxu0 0.0
        %384 = vmatprep.subr.mxu0 0.0
        %385 = vmatpush1.msra.mxu0 0.0
        %386 = vmatprep.subr.mxu0 0.0
        %387 = vmatpush1.msra.mxu0 0.0
        %388 = vmatprep.subr.mxu0 0.0
        %389 = vmatpush1.msra.mxu0 0.0
        %390 = vmatprep.subr.mxu0 0.0
        %391 = vmatpush1.msra.mxu0 0.0
        %392 = vmatprep.subr.mxu0 0.0
        %393 = vmatpush1.msra.mxu0 0.0
        %394 = vmatprep.subr.mxu0 0.0
        %395 = vmatpush1.msra.mxu0 0.0
        %396 = vmatprep.subr.mxu0 0.0
        %397 = vmatpush1.msra.mxu0 0.0
        %398 = vmatprep.subr.mxu0 0.0
        %399 = vmatpush1.msra.mxu0 0.0
        %400 = vmatprep.subr.mxu0 0.0
        %401 = vmatpush1.msra.mxu0 0.0
        %402 = vmatprep.subr.mxu0 0.0
        %403 = vmatpush1.msra.mxu0 0.0
        %404 = vmatprep.subr.mxu0 0.0
        %405 = vmatpush1.msra.mxu0 0.0
        %406 = vmatprep.subr.mxu0 0.0
        %407 = vmatpush1.msra.mxu0 0.0
        %408 = vmatprep.subr.mxu0 0.0
        %409 = vmatpush1.msra.mxu0 0.0
        %410 = vmatprep.subr.mxu0 0.0
        %411 = vmatpush1.msra.mxu0 0.0
        %412 = vmatprep.subr.mxu0 0.0
        %413 = vmatpush1.msra.mxu0 0.0
        %414 = vmatprep.subr.mxu0 0.0
        %415 = vmatpush1.msra.mxu0 0.0
        %416 = vmatprep.subr.mxu0 0.0
        %417 = vmatpush1.msra.mxu0 0.0
        %418 = vmatprep.subr.mxu0 0.0
        %419 = vmatpush1.msra.mxu0 0.0
        %420 = vmatprep.subr.mxu0 0.0
        %421 = vmatpush1.msra.mxu0 0.0
        %422 = vmatprep.subr.mxu0 0.0
        %423 = vmatpush1.msra.mxu0 0.0
        %424 = vmatprep.subr.mxu0 0.0
        %425 = vmatpush1.msra.mxu0 0.0
        %426 = vmatprep.subr.mxu0 0.0
        %427 = vmatpush1.msra.mxu0 0.0
        %428 = vmatprep.subr.mxu0 0.0
        %429 = vmatpush1.msra.mxu0 0.0
        %430 = vmatprep.subr.mxu0 0.0
        %431 = vmatpush1.msra.mxu0 0.0
        %432 = vmatprep.subr.mxu0 0.0
        %433 = vmatpush1.msra.mxu0 0.0
        %434 = vmatprep.mubr.f32.mxu0 0.0
        %435 = vmatmul.mubr.f32.gmra.mrb[0].mxu0 %v359
        %v436 = vpop.f32.mrb[0].mxu0
        %v437 = vadd.f32 %v355, %v436
        %v438 = vpop.f32.mrb[0].mxu0
        %439 = vmatprep.mubr.f32.mxu0 0.0
        %440 = vmatmul.mubr.f32.gmra.mrb[0].mxu0 %v362
        %v441 = vpop.f32.mrb[0].mxu0
        %v442 = vadd.f32 %v355, %v441
        %v443 = vpop.f32.mrb[0].mxu0
        %444 = vmatprep.mubr.f32.mxu0 0.0
        %445 = vmatmul.mubr.f32.gmra.mrb[0].mxu0 %v365
        %v446 = vpop.f32.mrb[0].mxu0
        %v447 = vadd.f32 %v355, %v446
        %v448 = vpop.f32.mrb[0].mxu0
        %449 = vmatprep.mubr.f32.mxu0 0.0
        %450 = vmatmul.mubr.f32.gmra.mrb[0].mxu0 %v368
        %v451 = vpop.f32.mrb[0].mxu0
        %v452 = vadd.f32 %v355, %v451
        %v453 = vpop.f32.mrb[0].mxu0
        %454 = vdwg.mxu0
        %v455 = vmax.f32 %v437, 0.0
        %v456 = vmax.f32 %v442, 0.0
        %v457 = vmax.f32 %v447, 0.0
        %v458 = vmax.f32 %v452, 0.0
        %v460 = vlaneseq
        %v461 = vshrl.u32 %v460, 7
        %v462 = vsub.s32 0, %v461
        %v463 = vrot.slane %v333, %v462
        %465 = vmatprep.subr.mxu0 0.0
        %466 = vmatpush1.msra.mxu0 %v317
        %467 = vmatprep.subr.mxu0 0.0
        %468 = vmatpush1.msra.mxu0 %v318
        %469 = vmatprep.subr.mxu0 0.0
        %470 = vmatpush1.msra.mxu0 %v319
        %471 = vmatprep.subr.mxu0 0.0
        %472 = vmatpush1.msra.mxu0 %v320
        %473 = vmatprep.subr.mxu0 0.0
        %474 = vmatpush1.msra.mxu0 %v321
        %475 = vmatprep.subr.mxu0 0.0
        %476 = vmatpush1.msra.mxu0 %v322
        %477 = vmatprep.subr.mxu0 0.0
        %478 = vmatpush1.msra.mxu0 %v323
        %479 = vmatprep.subr.mxu0 0.0
        %480 = vmatpush1.msra.mxu0 %v324
        %481 = vmatprep.subr.mxu0 0.0
        %482 = vmatpush1.msra.mxu0 %v325
        %483 = vmatprep.subr.mxu0 0.0
        %484 = vmatpush1.msra.mxu0 %v326
        %485 = vmatprep.subr.mxu0 0.0
        %486 = vmatpush1.msra.mxu0 %v327
        %487 = vmatprep.subr.mxu0 0.0
        %488 = vmatpush1.msra.mxu0 %v328
        %489 = vmatprep.subr.mxu0 0.0
        %490 = vmatpush1.msra.mxu0 %v329
        %491 = vmatprep.subr.mxu0 0.0
        %492 = vmatpush1.msra.mxu0 %v330
        %493 = vmatprep.subr.mxu0 0.0
        %494 = vmatpush1.msra.mxu0 %v331
        %495 = vmatprep.subr.mxu0 0.0
        %496 = vmatpush1.msra.mxu0 %v332
        %497 = vmatprep.subr.mxu0 0.0
        %498 = vmatpush1.msra.mxu0 0.0
        %499 = vmatprep.subr.mxu0 0.0
        %500 = vmatpush1.msra.mxu0 0.0
        %501 = vmatprep.subr.mxu0 0.0
        %502 = vmatpush1.msra.mxu0 0.0
        %503 = vmatprep.subr.mxu0 0.0
        %504 = vmatpush1.msra.mxu0 0.0
        %505 = vmatprep.subr.mxu0 0.0
        %506 = vmatpush1.msra.mxu0 0.0
        %507 = vmatprep.subr.mxu0 0.0
        %508 = vmatpush1.msra.mxu0 0.0
        %509 = vmatprep.subr.mxu0 0.0
        %510 = vmatpush1.msra.mxu0 0.0
        %511 = vmatprep.subr.mxu0 0.0
        %512 = vmatpush1.msra.mxu0 0.0
        %513 = vmatprep.subr.mxu0 0.0
        %514 = vmatpush1.msra.mxu0 0.0
        %515 = vmatprep.subr.mxu0 0.0
        %516 = vmatpush1.msra.mxu0 0.0
        %517 = vmatprep.subr.mxu0 0.0
        %518 = vmatpush1.msra.mxu0 0.0
        %519 = vmatprep.subr.mxu0 0.0
        %520 = vmatpush1.msra.mxu0 0.0
        %521 = vmatprep.subr.mxu0 0.0
        %522 = vmatpush1.msra.mxu0 0.0
        %523 = vmatprep.subr.mxu0 0.0
        %524 = vmatpush1.msra.mxu0 0.0
        %525 = vmatprep.subr.mxu0 0.0
        %526 = vmatpush1.msra.mxu0 0.0
        %527 = vmatprep.subr.mxu0 0.0
        %528 = vmatpush1.msra.mxu0 0.0
        %529 = vmatprep.mubr.f32.mxu0 0.0
        %530 = vmatmul.mubr.f32.gmra.mrb[0].mxu0 %v455
        %v531 = vpop.f32.mrb[0].mxu0
        %v532 = vadd.f32 %v463, %v531
        %v533 = vpop.f32.mrb[0].mxu0
        %534 = vmatprep.mubr.f32.mxu0 0.0
        %535 = vmatmul.mubr.f32.gmra.mrb[0].mxu0 %v456
        %v536 = vpop.f32.mrb[0].mxu0
        %v537 = vadd.f32 %v463, %v536
        %v538 = vpop.f32.mrb[0].mxu0
        %539 = vmatprep.mubr.f32.mxu0 0.0
        %540 = vmatmul.mubr.f32.gmra.mrb[0].mxu0 %v457
        %v541 = vpop.f32.mrb[0].mxu0
        %v542 = vadd.f32 %v463, %v541
        %v543 = vpop.f32.mrb[0].mxu0
        %544 = vmatprep.mubr.f32.mxu0 0.0
        %545 = vmatmul.mubr.f32.gmra.mrb[0].mxu0 %v458
        %v546 = vpop.f32.mrb[0].mxu0
        %v547 = vadd.f32 %v463, %v546
        %v548 = vpop.f32.mrb[0].mxu0
        %549 = vdwg.mxu0
        %v550 = vmax.f32 %v532, 0.0
        %v551 = vmax.f32 %v537, 0.0
        %v552 = vmax.f32 %v542, 0.0
        %v553 = vmax.f32 %v547, 0.0
        %v555 = vlaneseq
        %v556 = vshrl.u32 %v555, 7
        %v557 = vsub.s32 0, %v556
        %v558 = vrot.slane %v350, %v557
        %560 = vmatprep.subr.mxu0 0.0
        %561 = vmatpush1.msra.mxu0 %v334
        %562 = vmatprep.subr.mxu0 0.0
        %563 = vmatpush1.msra.mxu0 %v335
        %564 = vmatprep.subr.mxu0 0.0
        %565 = vmatpush1.msra.mxu0 %v336
        %566 = vmatprep.subr.mxu0 0.0
        %567 = vmatpush1.msra.mxu0 %v337
        %568 = vmatprep.subr.mxu0 0.0
        %569 = vmatpush1.msra.mxu0 %v338
        %570 = vmatprep.subr.mxu0 0.0
        %571 = vmatpush1.msra.mxu0 %v339
        %572 = vmatprep.subr.mxu0 0.0
        %573 = vmatpush1.msra.mxu0 %v340
        %574 = vmatprep.subr.mxu0 0.0
        %575 = vmatpush1.msra.mxu0 %v341
        %576 = vmatprep.subr.mxu0 0.0
        %577 = vmatpush1.msra.mxu0 %v342
        %578 = vmatprep.subr.mxu0 0.0
        %579 = vmatpush1.msra.mxu0 %v343
        %580 = vmatprep.subr.mxu0 0.0
        %581 = vmatpush1.msra.mxu0 %v344
        %582 = vmatprep.subr.mxu0 0.0
        %583 = vmatpush1.msra.mxu0 %v345
        %584 = vmatprep.subr.mxu0 0.0
        %585 = vmatpush1.msra.mxu0 %v346
        %586 = vmatprep.subr.mxu0 0.0
        %587 = vmatpush1.msra.mxu0 %v347
        %588 = vmatprep.subr.mxu0 0.0
        %589 = vmatpush1.msra.mxu0 %v348
        %590 = vmatprep.subr.mxu0 0.0
        %591 = vmatpush1.msra.mxu0 %v349
        %592 = vmatprep.subr.mxu0 0.0
        %593 = vmatpush1.msra.mxu0 0.0
        %594 = vmatprep.subr.mxu0 0.0
        %595 = vmatpush1.msra.mxu0 0.0
        %596 = vmatprep.subr.mxu0 0.0
        %597 = vmatpush1.msra.mxu0 0.0
        %598 = vmatprep.subr.mxu0 0.0
        %599 = vmatpush1.msra.mxu0 0.0
        %600 = vmatprep.subr.mxu0 0.0
        %601 = vmatpush1.msra.mxu0 0.0
        %602 = vmatprep.subr.mxu0 0.0
        %603 = vmatpush1.msra.mxu0 0.0
        %604 = vmatprep.subr.mxu0 0.0
        %605 = vmatpush1.msra.mxu0 0.0
        %606 = vmatprep.subr.mxu0 0.0
        %607 = vmatpush1.msra.mxu0 0.0
        %608 = vmatprep.subr.mxu0 0.0
        %609 = vmatpush1.msra.mxu0 0.0
        %610 = vmatprep.subr.mxu0 0.0
        %611 = vmatpush1.msra.mxu0 0.0
        %612 = vmatprep.subr.mxu0 0.0
        %613 = vmatpush1.msra.mxu0 0.0
        %614 = vmatprep.subr.mxu0 0.0
        %615 = vmatpush1.msra.mxu0 0.0
        %616 = vmatprep.subr.mxu0 0.0
        %617 = vmatpush1.msra.mxu0 0.0
        %618 = vmatprep.subr.mxu0 0.0
        %619 = vmatpush1.msra.mxu0 0.0
        %620 = vmatprep.subr.mxu0 0.0
        %621 = vmatpush1.msra.mxu0 0.0
        %622 = vmatprep.subr.mxu0 0.0
        %623 = vmatpush1.msra.mxu0 0.0
        %624 = vmatprep.mubr.f32.mxu0 0.0
        %625 = vmatmul.mubr.f32.gmra.mrb[0].mxu0 %v550
        %v626 = vpop.f32.mrb[0].mxu0
        %v627 = vadd.f32 %v558, %v626
        %v628 = vpop.f32.mrb[0].mxu0
        %629 = vmatprep.mubr.f32.mxu0 0.0
        %630 = vmatmul.mubr.f32.gmra.mrb[0].mxu0 %v551
        %v631 = vpop.f32.mrb[0].mxu0
        %v632 = vadd.f32 %v558, %v631
        %v633 = vpop.f32.mrb[0].mxu0
        %634 = vmatprep.mubr.f32.mxu0 0.0
        %635 = vmatmul.mubr.f32.gmra.mrb[0].mxu0 %v552
        %v636 = vpop.f32.mrb[0].mxu0
        %v637 = vadd.f32 %v558, %v636
        %v638 = vpop.f32.mrb[0].mxu0
        %639 = vmatprep.mubr.f32.mxu0 0.0
        %640 = vmatmul.mubr.f32.gmra.mrb[0].mxu0 %v553
        %v641 = vpop.f32.mrb[0].mxu0
        %v642 = vadd.f32 %v558, %v641
        %v643 = vpop.f32.mrb[0].mxu0
        %644 = vdwg.mxu0
        %645 = vst [vmem:[%s302] sm:$0xff] %v627
        %646 = vst [vmem:[%s302 + $0x8] sm:$0xff] %v632
        %647 = vst [vmem:[%s302 + $0x10] sm:$0xff] %v637
        %648 = vst [vmem:[%s302 + $0x18] sm:$0xff] %v642
        %s649 = sand.u32 %s183, 1
        %s650 = scalar_lea.sflag [#allocation4], %s649
        %s651 = sand.u32 %s183, 1
        %s652 = smul.addr %s651, 32
        %s653 = scalar_lea.vmem [#allocation7], %s652
        // Predicated region
        $region57: #{tpu_custom_call.1} parent=47 // pred_check
          %p654 = pneg %p193
        $region58: #{tpu_custom_call.1} parent=47 // pred_check_branch
          %656 = sbr.rel (%p654) target = $region60
        $region59: #{tpu_custom_call.1} parent=47 // pred_region
          %s657 = smul.u32 4, %s23
          %s659 = ssub.s32 512, 512
          %660 = vsyncadd %s650, %s659
          %s661 = smul.addr %s657, 128
          %s662 = scalar_lea.hbm %s7, %s661
          %s663 = sshll.u32 %s653, 4
          %s664 = int_to_ptr.vmem [resolvable:$true] %s663
          %669 = dma.vmem_to_hbm [thread:$0]  %s664, 512, %s662, %s650, 128, 128, 8
        $region60: #{tpu_custom_call.1} parent=47 // pred_fallthru
          _
      $region48: #{tpu_custom_call.1} parent=5 // pred_fallthru
        _
      %p670 = scmp.le.s32.totalorder 2, %s18
      // Predicated region
      $region61: #{tpu_custom_call.1} parent=5 // pred_check
        %p671 = pneg %p670
      $region62: #{tpu_custom_call.1} parent=5 // pred_check_branch
        %673 = sbr.rel (%p671) target = $region64
      $region63: #{tpu_custom_call.1} parent=5 // pred_region
        %s674 = ssub.s32 %s18, 2
        // Predicated region
        $region65: #{tpu_custom_call.1} parent=63 // pred_check
          %p675 = pneg %p199
        $region66: #{tpu_custom_call.1} parent=63 // pred_check_branch
          %677 = sbr.rel (%p675) target = $region68
        $region67: #{tpu_custom_call.1} parent=63 // pred_region
          %s678 = sand.u32 %s184, 1
          %s679 = scalar_lea.sflag [#allocation4], %s678
          %s680 = sand.u32 %s184, 1
          %s681 = smul.addr %s680, 32
          %s682 = scalar_lea.vmem [#allocation7], %s681
          %683 = dma.done %s679, 512
        $region68: #{tpu_custom_call.1} parent=63 // pred_fallthru
          _
      $region64: #{tpu_custom_call.1} parent=5 // pred_fallthru
        _
    $region6: #{tpu_custom_call.1} parent=1 // loop_footer
      %s22 = sadd.s32 1, %s18
    $region7: #{tpu_custom_call.1} parent=1 // loop_footer_branch
      %17 = sbr.rel target = $region3
    $region8: #{tpu_custom_call.1} parent=1 // loop_exit
      _
    %684 = vsyncpa [#allocation3], 1
    %s685 = scalar_lea.sflag [#allocation3], 1
    %686 = vsyncpa %s685, 1
    %687 = vsyncpa [#allocation6], 1
    %688 = vsyncpa [#allocation4], 1
    %s689 = scalar_lea.sflag [#allocation4], 1
    %690 = vsyncpa %s689, 1

</llo_original>
